<compile_context>
chip_gen: v6e
topology: v6e:2x2x1
jax: 0.10.0
libtpu: 0.0.40
codegen_flags: <defaults>
</compile_context>

<pallas_src>
import jax
import jax.numpy as jnp
from jax.experimental import pallas as pl
from jax.experimental.pallas import tpu as pltpu


# ----------------------------- Pallas kernel --------------------------------

def _seg_fused_kernel(x_ref, wb_ref, bb_ref, wh_ref, bh_ref, wc_ref, bc_ref,
                      r_ref, o_ref):
    # x_ref: (1, Cin, P) one batch element, channels-major, P = H*W flattened spatial.
    x = x_ref[0]                                                        # (Cin, P) f32

    # body: 1x1 conv + ReLU (stride-2 sampling is folded into r_ref, see wrapper).
    h = jnp.dot(wb_ref[...], x, preferred_element_type=jnp.float32) + bb_ref[...]
    h = jnp.maximum(h, 0.0)                                             # (Cb, P)

    # head: 1x1 conv + ReLU
    h = jnp.dot(wh_ref[...], h, preferred_element_type=jnp.float32) + bh_ref[...]
    h = jnp.maximum(h, 0.0)                                             # (Ch, P)

    # cls: 1x1 conv (no activation) -> per-pixel semantic logits
    logits = jnp.dot(wc_ref[...], h, preferred_element_type=jnp.float32) + bc_ref[...]  # (Cls, P)

    # stride-2 selection + bilinear upsample (align_corners=False) as one MXU matmul:
    # r_ref[h*W+w, i*Wout+j] = Ah[i,hf]*Aw[j,wf] if (h,w) == (2*hf, 2*wf) else 0.
    o_ref[0] = jnp.dot(logits, r_ref[...],
                       preferred_element_type=jnp.float32).astype(o_ref.dtype)          # (Cls, Hout*Wout)


# ------------------------------ wrappers -------------------------------------

def segmentation_forward(x_nchw, params, resample):
    """x_nchw: (N, Cin, H, W) f32.  params: channels-major 1x1-conv weights (Cout, Cin)
    and biases (Cout, 1).  resample: precomputed (H*W, H*W) stride-2-select +
    bilinear-upsample matrix.  Returns (N, classes, H, W) f32, NCHW like the PyTorch module."""
    wb, bb, wh, bh, wc, bc = params
    N, Cin, H, W = x_nchw.shape
    P = H * W
    Cb, Ch, Cls = wb.shape[0], wh.shape[0], wc.shape[0]
    HWout = resample.shape[1]

    x_flat = x_nchw.reshape(N, Cin, P)            # free contiguous reshape (stays NCHW order)

    out = pl.pallas_call(
        _seg_fused_kernel,
        out_shape=jax.ShapeDtypeStruct((N, Cls, HWout), jnp.float32),
        grid=(N,),
        in_specs=[
            pl.BlockSpec((1, Cin, P), lambda n: (n, 0, 0)),     # input, lane-dense (P=256)
            pl.BlockSpec((Cb, Cin), lambda n: (0, 0)),          # body weight
            pl.BlockSpec((Cb, 1), lambda n: (0, 0)),            # body bias
            pl.BlockSpec((Ch, Cb), lambda n: (0, 0)),           # head weight
            pl.BlockSpec((Ch, 1), lambda n: (0, 0)),            # head bias
            pl.BlockSpec((Cls, Ch), lambda n: (0, 0)),          # cls weight
            pl.BlockSpec((Cls, 1), lambda n: (0, 0)),           # cls bias
            pl.BlockSpec((P, HWout), lambda n: (0, 0)),         # fused resample matrix
        ],
        out_specs=pl.BlockSpec((1, Cls, HWout), lambda n: (n, 0, 0)),   # lane-dense NCHW out
        compiler_params=pltpu.CompilerParams(dimension_semantics=("parallel",)),
    )(x_flat, wb, bb, wh, bh, wc, bc, resample)

    return out.reshape(N, Cls, H, W)              # free contiguous reshape -> NCHW


def bilinear_matrix(out_size, in_size):
    """Interpolation matrix matching F.interpolate(mode='bilinear', align_corners=False)."""
    d = jnp.arange(out_size, dtype=jnp.float32)
    scale = in_size / out_size
    src = (d + 0.5) * scale - 0.5
    src = jnp.maximum(src, 0.0)                    # PyTorch clamps the source index at 0
    i0 = jnp.minimum(jnp.floor(src).astype(jnp.int32), in_size - 1)
    i1 = jnp.minimum(i0 + 1, in_size - 1)
    frac = src - i0.astype(jnp.float32)
    rows = jnp.arange(out_size)
    A = jnp.zeros((out_size, in_size), jnp.float32)
    A = A.at[rows, i0].add(1.0 - frac)
    A = A.at[rows, i1].add(frac)
    return A


def make_resample_matrix(H, W, stride=2):
    """(H*W, H*W) matrix R such that logits_fullres(Cls, H*W) @ R equals the bilinear
    upsample (align_corners=False, size=(H, W)) of the stride-`stride` downsampled logits.
    Precomputed once per shape -- hoisted off the forward path."""
    Hf, Wf = -(-H // stride), -(-W // stride)      # stride-2 1x1-conv output size (= ceil)
    ah = bilinear_matrix(H, Hf)                    # (Hout=H, Hf)
    aw = bilinear_matrix(W, Wf)                    # (Wout=W, Wf)
    # Embed the stride-2 pixel selection: feature row hf lives at full-res row stride*hf.
    ah_s = jnp.zeros((H, H), jnp.float32).at[:, 0:stride * Hf:stride].set(ah)
    aw_s = jnp.zeros((W, W), jnp.float32).at[:, 0:stride * Wf:stride].set(aw)
    # kron(ah_s, aw_s)[i*W + j, h*W + w] = ah_s[i, h] * aw_s[j, w]; transpose for X @ R.
    return jnp.kron(ah_s, aw_s).T                  # (H*W, Hout*Wout)


# ------------------------------ reference (plain JAX) ------------------------

def _reference(x_nchw, params):
    """Straightforward reference: stride-2 downsample -> 1x1 conv chain -> bilinear upsample."""
    wb, bb, wh, bh, wc, bc = params
    N, Cin, H, W = x_nchw.shape
    x = x_nchw[:, :, ::2, ::2]                     # body's stride-2 sampling
    h = jnp.maximum(jnp.einsum('oc,nchw->nohw', wb, x) + bb.reshape(1, -1, 1, 1), 0.0)
    h = jnp.maximum(jnp.einsum('oc,nchw->nohw', wh, h) + bh.reshape(1, -1, 1, 1), 0.0)
    logits = jnp.einsum('oc,nchw->nohw', wc, h) + bc.reshape(1, -1, 1, 1)
    ah = bilinear_matrix(H, logits.shape[2])
    aw = bilinear_matrix(W, logits.shape[3])
    return jnp.einsum('ih,nchw,jw->ncij', ah, logits, aw)


# ------------------------------ main ------------------------------------------

if __name__ == "__main__":
    key = jax.random.PRNGKey(0)
    N, Cin, H, W = 2, 4, 16, 16          # input image (NCHW, like the PyTorch module)
    Cb, Ch, Cls = 8, 32, 8               # body channels, head_channels, classes

    ks = jax.random.split(key, 7)
    x_nchw = jax.random.normal(ks[0], (N, Cin, H, W), jnp.float32)
    # 1x1-conv weights in their native PyTorch layout (Cout, Cin); biases as (Cout, 1).
    wb = 0.1 * jax.random.normal(ks[1], (Cb, Cin), jnp.float32)
    bb = 0.1 * jax.random.normal(ks[2], (Cb, 1), jnp.float32)
    wh = 0.1 * jax.random.normal(ks[3], (Ch, Cb), jnp.float32)
    bh = 0.1 * jax.random.normal(ks[4], (Ch, 1), jnp.float32)
    wc = 0.1 * jax.random.normal(ks[5], (Cls, Ch), jnp.float32)
    bc = 0.1 * jax.random.normal(ks[6], (Cls, 1), jnp.float32)
    params = (wb, bb, wh, bh, wc, bc)

    # Hoisted: depends only on the input spatial shape, built once per shape.
    resample = make_resample_matrix(H, W)

    fwd = jax.jit(segmentation_forward)
    out = fwd(x_nchw, params, resample)
    jax.block_until_ready(out)
    assert out.shape == (N, Cls, H, W), out.shape

    ref = _reference(x_nchw, params)
    assert jnp.allclose(out, ref, atol=1e-4, rtol=1e-4), "mismatch vs. JAX reference"

    print("KERNEL_OK")
</pallas_src>

<mosaic_0001>
module attributes {stable_mosaic.version = 11 : i64} {
  func.func @_seg_fused_kernel(%arg0: i32, %arg1: memref<1x4x256xf32, #tpu.memory_space<vmem>>, %arg2: memref<8x4xf32, #tpu.memory_space<vmem>>, %arg3: memref<8x1xf32, #tpu.memory_space<vmem>>, %arg4: memref<32x8xf32, #tpu.memory_space<vmem>>, %arg5: memref<32x1xf32, #tpu.memory_space<vmem>>, %arg6: memref<8x32xf32, #tpu.memory_space<vmem>>, %arg7: memref<8x1xf32, #tpu.memory_space<vmem>>, %arg8: memref<256x256xf32, #tpu.memory_space<vmem>>, %arg9: memref<1x8x256xf32, #tpu.memory_space<vmem>>) attributes {dimension_semantics = [#tpu.dimension_semantics<parallel>], iteration_bounds = array<i64: 2>, scalar_prefetch = 0 : i64, scratch_operands = 0 : i64, tpu.core_type = #tpu.core_type<tc>, window_params = [{transform_indices = @transform_0, window_bounds = array<i64: 1, 4, 256>}, {pipeline_mode = #tpu.pipeline_mode<synchronous>, transform_indices = @transform_1, window_bounds = array<i64: 8, 4>}, {pipeline_mode = #tpu.pipeline_mode<synchronous>, transform_indices = @transform_2, window_bounds = array<i64: 8, 1>}, {pipeline_mode = #tpu.pipeline_mode<synchronous>, transform_indices = @transform_3, window_bounds = array<i64: 32, 8>}, {pipeline_mode = #tpu.pipeline_mode<synchronous>, transform_indices = @transform_4, window_bounds = array<i64: 32, 1>}, {pipeline_mode = #tpu.pipeline_mode<synchronous>, transform_indices = @transform_5, window_bounds = array<i64: 8, 32>}, {pipeline_mode = #tpu.pipeline_mode<synchronous>, transform_indices = @transform_6, window_bounds = array<i64: 8, 1>}, {pipeline_mode = #tpu.pipeline_mode<synchronous>, transform_indices = @transform_7, window_bounds = array<i64: 256, 256>}, {transform_indices = @transform_8, window_bounds = array<i64: 1, 8, 256>}]} {
    %c0 = arith.constant 0 : index
    %c0_0 = arith.constant 0 : index
    %c0_1 = arith.constant 0 : index
    %0 = vector.load %arg1[%c0, %c0_0, %c0_1] : memref<1x4x256xf32, #tpu.memory_space<vmem>>, vector<1x4x256xf32>
    %1 = vector.shape_cast %0 : vector<1x4x256xf32> to vector<4x256xf32>
    %c0_2 = arith.constant 0 : index
    %c0_3 = arith.constant 0 : index
    %2 = vector.load %arg2[%c0_2, %c0_3] : memref<8x4xf32, #tpu.memory_space<vmem>>, vector<8x4xf32>
    %cst = arith.constant dense<0.000000e+00> : vector<8x256xf32>
    %3 = tpu.matmul %2, %1, %cst {dimension_numbers = #tpu.dot_dimension_numbers<[1], [0], [0], [1], [0, 0, 1, 1], [], []>} : vector<8x4xf32>, vector<4x256xf32>, vector<8x256xf32> -> vector<8x256xf32>
    %c0_4 = arith.constant 0 : index
    %c0_5 = arith.constant 0 : index
    %4 = vector.load %arg3[%c0_4, %c0_5] : memref<8x1xf32, #tpu.memory_space<vmem>>, vector<8x1xf32>
    %5 = vector.broadcast %4 : vector<8x1xf32> to vector<8x256xf32>
    %6 = arith.addf %3, %5 : vector<8x256xf32>
    %cst_6 = arith.constant 0.000000e+00 : f32
    %7 = vector.broadcast %cst_6 : f32 to vector<8x256xf32>
    %8 = arith.maximumf %6, %7 : vector<8x256xf32>
    %c0_7 = arith.constant 0 : index
    %c0_8 = arith.constant 0 : index
    %9 = vector.load %arg4[%c0_7, %c0_8] : memref<32x8xf32, #tpu.memory_space<vmem>>, vector<32x8xf32>
    %cst_9 = arith.constant dense<0.000000e+00> : vector<32x256xf32>
    %10 = tpu.matmul %9, %8, %cst_9 {dimension_numbers = #tpu.dot_dimension_numbers<[1], [0], [0], [1], [0, 0, 1, 1], [], []>} : vector<32x8xf32>, vector<8x256xf32>, vector<32x256xf32> -> vector<32x256xf32>
    %c0_10 = arith.constant 0 : index
    %c0_11 = arith.constant 0 : index
    %11 = vector.load %arg5[%c0_10, %c0_11] : memref<32x1xf32, #tpu.memory_space<vmem>>, vector<32x1xf32>
    %12 = vector.broadcast %11 : vector<32x1xf32> to vector<32x256xf32>
    %13 = arith.addf %10, %12 : vector<32x256xf32>
    %cst_12 = arith.constant 0.000000e+00 : f32
    %14 = vector.broadcast %cst_12 : f32 to vector<32x256xf32>
    %15 = arith.maximumf %13, %14 : vector<32x256xf32>
    %c0_13 = arith.constant 0 : index
    %c0_14 = arith.constant 0 : index
    %16 = vector.load %arg6[%c0_13, %c0_14] : memref<8x32xf32, #tpu.memory_space<vmem>>, vector<8x32xf32>
    %cst_15 = arith.constant dense<0.000000e+00> : vector<8x256xf32>
    %17 = tpu.matmul %16, %15, %cst_15 {dimension_numbers = #tpu.dot_dimension_numbers<[1], [0], [0], [1], [0, 0, 1, 1], [], []>} : vector<8x32xf32>, vector<32x256xf32>, vector<8x256xf32> -> vector<8x256xf32>
    %c0_16 = arith.constant 0 : index
    %c0_17 = arith.constant 0 : index
    %18 = vector.load %arg7[%c0_16, %c0_17] : memref<8x1xf32, #tpu.memory_space<vmem>>, vector<8x1xf32>
    %19 = vector.broadcast %18 : vector<8x1xf32> to vector<8x256xf32>
    %20 = arith.addf %17, %19 : vector<8x256xf32>
    %c0_18 = arith.constant 0 : index
    %c0_19 = arith.constant 0 : index
    %21 = vector.load %arg8[%c0_18, %c0_19] : memref<256x256xf32, #tpu.memory_space<vmem>>, vector<256x256xf32>
    %cst_20 = arith.constant dense<0.000000e+00> : vector<8x256xf32>
    %22 = tpu.matmul %20, %21, %cst_20 {dimension_numbers = #tpu.dot_dimension_numbers<[1], [0], [0], [1], [0, 0, 1, 1], [], []>} : vector<8x256xf32>, vector<256x256xf32>, vector<8x256xf32> -> vector<8x256xf32>
    %c0_21 = arith.constant 0 : index
    %c0_22 = arith.constant 0 : index
    %c0_23 = arith.constant 0 : index
    %23 = vector.load %arg9[%c0_21, %c0_22, %c0_23] : memref<1x8x256xf32, #tpu.memory_space<vmem>>, vector<1x8x256xf32>
    %24 = vector.shape_cast %23 : vector<1x8x256xf32> to vector<8x256xf32>
    %25 = vector.shape_cast %22 : vector<8x256xf32> to vector<1x8x256xf32>
    tpu.vector_store %arg9[%c0_21, %c0_22, %c0_23], %25 {strides = array<i32>} : memref<1x8x256xf32, #tpu.memory_space<vmem>>, vector<1x8x256xf32>,
    return
  }
  func.func @transform_0(%arg0: i32) -> (i32, i32, i32) {
    %c0_i32 = arith.constant 0 : i32
    %c0_i32_0 = arith.constant 0 : i32
    %c0_i32_1 = arith.constant 0 : i32
    return %arg0, %c0_i32, %c0_i32_0 : i32, i32, i32
  }
  func.func @transform_1(%arg0: i32) -> (i32, i32) {
    %c0_i32 = arith.constant 0 : i32
    %c0_i32_0 = arith.constant 0 : i32
    %c0_i32_1 = arith.constant 0 : i32
    return %c0_i32, %c0_i32_0 : i32, i32
  }
  func.func @transform_2(%arg0: i32) -> (i32, i32) {
    %c0_i32 = arith.constant 0 : i32
    %c0_i32_0 = arith.constant 0 : i32
    %c0_i32_1 = arith.constant 0 : i32
    return %c0_i32, %c0_i32_0 : i32, i32
  }
  func.func @transform_3(%arg0: i32) -> (i32, i32) {
    %c0_i32 = arith.constant 0 : i32
    %c0_i32_0 = arith.constant 0 : i32
    %c0_i32_1 = arith.constant 0 : i32
    return %c0_i32, %c0_i32_0 : i32, i32
  }
  func.func @transform_4(%arg0: i32) -> (i32, i32) {
    %c0_i32 = arith.constant 0 : i32
    %c0_i32_0 = arith.constant 0 : i32
    %c0_i32_1 = arith.constant 0 : i32
    return %c0_i32, %c0_i32_0 : i32, i32
  }
  func.func @transform_5(%arg0: i32) -> (i32, i32) {
    %c0_i32 = arith.constant 0 : i32
    %c0_i32_0 = arith.constant 0 : i32
    %c0_i32_1 = arith.constant 0 : i32
    return %c0_i32, %c0_i32_0 : i32, i32
  }
  func.func @transform_6(%arg0: i32) -> (i32, i32) {
    %c0_i32 = arith.constant 0 : i32
    %c0_i32_0 = arith.constant 0 : i32
    %c0_i32_1 = arith.constant 0 : i32
    return %c0_i32, %c0_i32_0 : i32, i32
  }
  func.func @transform_7(%arg0: i32) -> (i32, i32) {
    %c0_i32 = arith.constant 0 : i32
    %c0_i32_0 = arith.constant 0 : i32
    %c0_i32_1 = arith.constant 0 : i32
    return %c0_i32, %c0_i32_0 : i32, i32
  }
  func.func @transform_8(%arg0: i32) -> (i32, i32, i32) {
    %c0_i32 = arith.constant 0 : i32
    %c0_i32_0 = arith.constant 0 : i32
    %c0_i32_1 = arith.constant 0 : i32
    return %arg0, %c0_i32, %c0_i32_0 : i32, i32, i32
  }
}

</mosaic_0001>

<llo_original>
// kernel: segmentation_forward.1
$region0: #{segmentation_forward.1}
  #allocation0 [shape = 'u32[]', space=smem, size = 0x4, offset = 0x4, fixed_abs, tag = 'smem constant byte address 0x4 - core index']
  #allocation1 [shape = 'u32[144,128]{1,0:T(1,128)}', space=vmem, size = 0x12000, scoped, tag = 'internal scratch']
  %s0 = inlined_call_operand.vmem [shape: f32[2,4,256], index: 0, kind: input, shape index: {}]
  %s1 = inlined_call_operand.vmem [shape: f32[8,4], index: 1, kind: input, shape index: {}]
  %s2 = inlined_call_operand.vmem [shape: f32[8,1], index: 2, kind: input, shape index: {}]
  %s3 = inlined_call_operand.vmem [shape: f32[32,8], index: 3, kind: input, shape index: {}]
  %s4 = inlined_call_operand.vmem [shape: f32[32,1], index: 4, kind: input, shape index: {}]
  %s5 = inlined_call_operand.vmem [shape: f32[8,32], index: 5, kind: input, shape index: {}]
  %s6 = inlined_call_operand.vmem [shape: f32[8,1], index: 6, kind: input, shape index: {}]
  %s7 = inlined_call_operand.hbm [shape: f32[256,256], index: 7, kind: input, shape index: {}]
  %s8 = inlined_call_operand.vmem [shape: f32[2,8,256], index: 8, kind: output, shape index: {}]
  %s9 = sld [smem:[#allocation0]]
  $region69: #{segmentation_forward.1} parent=0
    _
  %s11 = ssub.s32 1, %s9
  %s12 = scalar_select 0, %s11, %s9
  $region1: #{segmentation_forward.1} parent=0
    #allocation2 [shape = 'u8[262144]{0}', space=vmem, size = 0x40000, scoped, tag = 'input window, operand 7, single buffered']
    #allocation3 [shape = 's32[2]{0}', space=sflag, size = 0x8, scoped, tag = 'scoped memory for segmentation_forward.1']
    %13 = vsyncpa [#allocation3], 0
    loop: start=0, step=1, limit=4
    $region2: #{segmentation_forward.1} parent=1 // loop_pre_header
      _
    $region3: #{segmentation_forward.1} parent=1 // loop_header
      %s15 = sphi 0, %s19
      %p16 = scmp.ge.s32.totalorder %s15, 4
      %s25 = sphi 0, %s27
      %s28 = sphi 0, %s25
      %s29 = sphi 0, %s28
      %s45 = sphi 0, %s29
      %s49 = sphi 0, %s49
      %s51 = sphi 0, %s49
      %s52 = sphi 0, %s51
      %s66 = sphi 0, %s52
      %s70 = sphi 0, %s70
      %s72 = sphi 0, %s70
      %s73 = sphi 0, %s72
      %s87 = sphi 0, %s73
      %s91 = sphi 0, %s91
      %s93 = sphi 0, %s91
      %s94 = sphi 0, %s93
      %s108 = sphi 0, %s94
      %s112 = sphi 0, %s112
      %s114 = sphi 0, %s112
      %s115 = sphi 0, %s114
      %s129 = sphi 0, %s115
      %s133 = sphi 0, %s133
      %s135 = sphi 0, %s133
      %s136 = sphi 0, %s135
      %s150 = sphi 0, %s136
      %s154 = sphi 0, %s154
      %s156 = sphi 0, %s154
      %s157 = sphi 0, %s156
      %s171 = sphi 0, %s157
      %s175 = sphi 0, %s175
      %s177 = sphi 0, %s175
      %s178 = sphi 0, %s177
      %s192 = sphi 0, %s178
      %s198 = sphi 0, %s200
      %s201 = sphi 0, %s198
      %s202 = sphi 0, %s201
      %s218 = sphi 0, %s202
    $region4: #{segmentation_forward.1} parent=1 // loop_header_branch
      %18 = sbr.rel (%p16) target = $region8
    $region5: #{segmentation_forward.1} parent=1 // loop_body
      %s20 = ssub.s32 %s15, 1
      %s21 = ssub.s32 %s15, 2
      %s22 = sadd.s32 %s15, 1
      %s23 = ssub.s32 %s15, %s22
      %p24 = scmp.eq.s32.totalorder %s23, 0
      %s26 = sadd.s32 %s25, 1
      %s27 = scalar_select %p24, %s25, %s26
      %p30 = pneg %p24
      %p31 = scmp.eq.s32.totalorder %s15, 1
      %p32 = por %p30, %p31
      %p33 = scmp.ne.s32.totalorder %s25, %s28
      %p34 = scmp.eq.s32.totalorder %s15, 0
      %p35 = por %p33, %p34
      %p36 = scmp.ne.s32.totalorder %s25, %s28
      %p37 = scmp.eq.s32.totalorder %s20, 1
      %p38 = por %p36, %p37
      %p39 = scmp.ne.s32.totalorder %s28, %s29
      %p40 = scmp.eq.s32.totalorder %s20, 0
      %p41 = por %p39, %p40
      %p42 = scmp.ne.s32.totalorder %s28, %s29
      %p43 = scmp.eq.s32.totalorder %s21, 1
      %p44 = por %p42, %p43
      %p46 = scmp.ne.s32.totalorder %s29, %s45
      %p47 = scmp.eq.s32.totalorder %s21, 0
      %p48 = por %p46, %p47
      %s50 = sadd.s32 %s49, 1
      %p53 = scmp.eq.s32.totalorder %s15, 1
      %p54 = scmp.ne.s32.totalorder %s49, %s51
      %p55 = scmp.eq.s32.totalorder %s15, 0
      %p56 = por %p54, %p55
      %p57 = scmp.ne.s32.totalorder %s49, %s51
      %p58 = scmp.eq.s32.totalorder %s20, 1
      %p59 = por %p57, %p58
      %p60 = scmp.ne.s32.totalorder %s51, %s52
      %p61 = scmp.eq.s32.totalorder %s20, 0
      %p62 = por %p60, %p61
      %p63 = scmp.ne.s32.totalorder %s51, %s52
      %p64 = scmp.eq.s32.totalorder %s21, 1
      %p65 = por %p63, %p64
      %p67 = scmp.ne.s32.totalorder %s52, %s66
      %p68 = scmp.eq.s32.totalorder %s21, 0
      %p69 = por %p67, %p68
      %s71 = sadd.s32 %s70, 1
      %p74 = scmp.eq.s32.totalorder %s15, 1
      %p75 = scmp.ne.s32.totalorder %s70, %s72
      %p76 = scmp.eq.s32.totalorder %s15, 0
      %p77 = por %p75, %p76
      %p78 = scmp.ne.s32.totalorder %s70, %s72
      %p79 = scmp.eq.s32.totalorder %s20, 1
      %p80 = por %p78, %p79
      %p81 = scmp.ne.s32.totalorder %s72, %s73
      %p82 = scmp.eq.s32.totalorder %s20, 0
      %p83 = por %p81, %p82
      %p84 = scmp.ne.s32.totalorder %s72, %s73
      %p85 = scmp.eq.s32.totalorder %s21, 1
      %p86 = por %p84, %p85
      %p88 = scmp.ne.s32.totalorder %s73, %s87
      %p89 = scmp.eq.s32.totalorder %s21, 0
      %p90 = por %p88, %p89
      %s92 = sadd.s32 %s91, 1
      %p95 = scmp.eq.s32.totalorder %s15, 1
      %p96 = scmp.ne.s32.totalorder %s91, %s93
      %p97 = scmp.eq.s32.totalorder %s15, 0
      %p98 = por %p96, %p97
      %p99 = scmp.ne.s32.totalorder %s91, %s93
      %p100 = scmp.eq.s32.totalorder %s20, 1
      %p101 = por %p99, %p100
      %p102 = scmp.ne.s32.totalorder %s93, %s94
      %p103 = scmp.eq.s32.totalorder %s20, 0
      %p104 = por %p102, %p103
      %p105 = scmp.ne.s32.totalorder %s93, %s94
      %p106 = scmp.eq.s32.totalorder %s21, 1
      %p107 = por %p105, %p106
      %p109 = scmp.ne.s32.totalorder %s94, %s108
      %p110 = scmp.eq.s32.totalorder %s21, 0
      %p111 = por %p109, %p110
      %s113 = sadd.s32 %s112, 1
      %p116 = scmp.eq.s32.totalorder %s15, 1
      %p117 = scmp.ne.s32.totalorder %s112, %s114
      %p118 = scmp.eq.s32.totalorder %s15, 0
      %p119 = por %p117, %p118
      %p120 = scmp.ne.s32.totalorder %s112, %s114
      %p121 = scmp.eq.s32.totalorder %s20, 1
      %p122 = por %p120, %p121
      %p123 = scmp.ne.s32.totalorder %s114, %s115
      %p124 = scmp.eq.s32.totalorder %s20, 0
      %p125 = por %p123, %p124
      %p126 = scmp.ne.s32.totalorder %s114, %s115
      %p127 = scmp.eq.s32.totalorder %s21, 1
      %p128 = por %p126, %p127
      %p130 = scmp.ne.s32.totalorder %s115, %s129
      %p131 = scmp.eq.s32.totalorder %s21, 0
      %p132 = por %p130, %p131
      %s134 = sadd.s32 %s133, 1
      %p137 = scmp.eq.s32.totalorder %s15, 1
      %p138 = scmp.ne.s32.totalorder %s133, %s135
      %p139 = scmp.eq.s32.totalorder %s15, 0
      %p140 = por %p138, %p139
      %p141 = scmp.ne.s32.totalorder %s133, %s135
      %p142 = scmp.eq.s32.totalorder %s20, 1
      %p143 = por %p141, %p142
      %p144 = scmp.ne.s32.totalorder %s135, %s136
      %p145 = scmp.eq.s32.totalorder %s20, 0
      %p146 = por %p144, %p145
      %p147 = scmp.ne.s32.totalorder %s135, %s136
      %p148 = scmp.eq.s32.totalorder %s21, 1
      %p149 = por %p147, %p148
      %p151 = scmp.ne.s32.totalorder %s136, %s150
      %p152 = scmp.eq.s32.totalorder %s21, 0
      %p153 = por %p151, %p152
      %s155 = sadd.s32 %s154, 1
      %p158 = scmp.eq.s32.totalorder %s15, 1
      %p159 = scmp.ne.s32.totalorder %s154, %s156
      %p160 = scmp.eq.s32.totalorder %s15, 0
      %p161 = por %p159, %p160
      %p162 = scmp.ne.s32.totalorder %s154, %s156
      %p163 = scmp.eq.s32.totalorder %s20, 1
      %p164 = por %p162, %p163
      %p165 = scmp.ne.s32.totalorder %s156, %s157
      %p166 = scmp.eq.s32.totalorder %s20, 0
      %p167 = por %p165, %p166
      %p168 = scmp.ne.s32.totalorder %s156, %s157
      %p169 = scmp.eq.s32.totalorder %s21, 1
      %p170 = por %p168, %p169
      %p172 = scmp.ne.s32.totalorder %s157, %s171
      %p173 = scmp.eq.s32.totalorder %s21, 0
      %p174 = por %p172, %p173
      %s176 = sadd.s32 %s175, 1
      %p179 = scmp.eq.s32.totalorder %s15, 1
      %p180 = scmp.ne.s32.totalorder %s175, %s177
      %p181 = scmp.eq.s32.totalorder %s15, 0
      %p182 = por %p180, %p181
      %p183 = scmp.ne.s32.totalorder %s175, %s177
      %p184 = scmp.eq.s32.totalorder %s20, 1
      %p185 = por %p183, %p184
      %p186 = scmp.ne.s32.totalorder %s177, %s178
      %p187 = scmp.eq.s32.totalorder %s20, 0
      %p188 = por %p186, %p187
      %p189 = scmp.ne.s32.totalorder %s177, %s178
      %p190 = scmp.eq.s32.totalorder %s21, 1
      %p191 = por %p189, %p190
      %p193 = scmp.ne.s32.totalorder %s178, %s192
      %p194 = scmp.eq.s32.totalorder %s21, 0
      %p195 = por %p193, %p194
      %s196 = ssub.s32 %s15, %s22
      %p197 = scmp.eq.s32.totalorder %s196, 0
      %s199 = sadd.s32 %s198, 1
      %s200 = scalar_select %p197, %s198, %s199
      %p203 = pneg %p197
      %p204 = scmp.eq.s32.totalorder %s15, 1
      %p205 = por %p203, %p204
      %p206 = scmp.ne.s32.totalorder %s198, %s201
      %p207 = scmp.eq.s32.totalorder %s15, 0
      %p208 = por %p206, %p207
      %p209 = scmp.ne.s32.totalorder %s198, %s201
      %p210 = scmp.eq.s32.totalorder %s20, 1
      %p211 = por %p209, %p210
      %p212 = scmp.ne.s32.totalorder %s201, %s202
      %p213 = scmp.eq.s32.totalorder %s20, 0
      %p214 = por %p212, %p213
      %p215 = scmp.ne.s32.totalorder %s201, %s202
      %p216 = scmp.eq.s32.totalorder %s21, 1
      %p217 = por %p215, %p216
      %p219 = scmp.ne.s32.totalorder %s202, %s218
      %p220 = scmp.eq.s32.totalorder %s21, 0
      %p221 = por %p219, %p220
      %p222 = scmp.le.s32.totalorder 1, %s15
      %p223 = scmp.lt.s32.totalorder %s15, 3
      %p224 = pnand %p222, %p223
      %p225 = pneg %p224
      // Predicated region
      $region9: #{segmentation_forward.1} parent=5 // pred_check
        _
      $region10: #{segmentation_forward.1} parent=5 // pred_check_branch
        %227 = sbr.rel (%p224) target = $region12
      $region11: #{segmentation_forward.1} parent=5 // pred_region
        %s228 = ssub.s32 %s15, 1
        // Predicated region
        $region13: #{segmentation_forward.1} parent=11 // pred_check
          %p229 = pneg %p62
        $region14: #{segmentation_forward.1} parent=11 // pred_check_branch
          %231 = sbr.rel (%p229) target = $region16
        $region15: #{segmentation_forward.1} parent=11 // pred_region
          _
        $region16: #{segmentation_forward.1} parent=11 // pred_fallthru
          _
        // Predicated region
        $region17: #{segmentation_forward.1} parent=11 // pred_check
          %p232 = pneg %p83
        $region18: #{segmentation_forward.1} parent=11 // pred_check_branch
          %234 = sbr.rel (%p232) target = $region20
        $region19: #{segmentation_forward.1} parent=11 // pred_region
          _
        $region20: #{segmentation_forward.1} parent=11 // pred_fallthru
          _
        // Predicated region
        $region21: #{segmentation_forward.1} parent=11 // pred_check
          %p235 = pneg %p104
        $region22: #{segmentation_forward.1} parent=11 // pred_check_branch
          %237 = sbr.rel (%p235) target = $region24
        $region23: #{segmentation_forward.1} parent=11 // pred_region
          _
        $region24: #{segmentation_forward.1} parent=11 // pred_fallthru
          _
        // Predicated region
        $region25: #{segmentation_forward.1} parent=11 // pred_check
          %p238 = pneg %p125
        $region26: #{segmentation_forward.1} parent=11 // pred_check_branch
          %240 = sbr.rel (%p238) target = $region28
        $region27: #{segmentation_forward.1} parent=11 // pred_region
          _
        $region28: #{segmentation_forward.1} parent=11 // pred_fallthru
          _
        // Predicated region
        $region29: #{segmentation_forward.1} parent=11 // pred_check
          %p241 = pneg %p146
        $region30: #{segmentation_forward.1} parent=11 // pred_check_branch
          %243 = sbr.rel (%p241) target = $region32
        $region31: #{segmentation_forward.1} parent=11 // pred_region
          _
        $region32: #{segmentation_forward.1} parent=11 // pred_fallthru
          _
        // Predicated region
        $region33: #{segmentation_forward.1} parent=11 // pred_check
          %p244 = pneg %p167
        $region34: #{segmentation_forward.1} parent=11 // pred_check_branch
          %246 = sbr.rel (%p244) target = $region36
        $region35: #{segmentation_forward.1} parent=11 // pred_region
          _
        $region36: #{segmentation_forward.1} parent=11 // pred_fallthru
          _
        // Predicated region
        $region37: #{segmentation_forward.1} parent=11 // pred_check
          %p247 = pneg %p188
        $region38: #{segmentation_forward.1} parent=11 // pred_check_branch
          %249 = sbr.rel (%p247) target = $region40
        $region39: #{segmentation_forward.1} parent=11 // pred_region
          %s251 = ssub.s32 8192, 8192
          %252 = vsyncadd [#allocation3], %s251
          %s253 = sshll.u32 [#allocation2], 4
          %s254 = int_to_ptr.vmem [resolvable:$true] %s253
          %259 = dma.hbm_to_vmem [thread:$0]  %s7, 8192, %s254, [#allocation3], 256, 256, 16
        $region40: #{segmentation_forward.1} parent=11 // pred_fallthru
          _
      $region12: #{segmentation_forward.1} parent=5 // pred_fallthru
        _
      %p260 = scmp.lt.s32.totalorder %s15, 2
      // Predicated region
      $region41: #{segmentation_forward.1} parent=5 // pred_check
        %p261 = pneg %p260
      $region42: #{segmentation_forward.1} parent=5 // pred_check_branch
        %263 = sbr.rel (%p261) target = $region44
      $region43: #{segmentation_forward.1} parent=5 // pred_region
        // Predicated region
        $region45: #{segmentation_forward.1} parent=43 // pred_check
          %p264 = pneg %p35
        $region46: #{segmentation_forward.1} parent=43 // pred_check_branch
          %266 = sbr.rel (%p264) target = $region48
        $region47: #{segmentation_forward.1} parent=43 // pred_region
          %p267 = scmp.lt.s32.totalorder %s15, 1
          %s268 = scalar_select %p267, %s15, 1
          %s269 = smul.addr %s268, 2
          %s270 = smul.addr %s269, 4
          %s271 = scalar_lea.vmem %s0, %s270
        $region48: #{segmentation_forward.1} parent=43 // pred_fallthru
          _
      $region44: #{segmentation_forward.1} parent=5 // pred_fallthru
        _
      %p272 = scmp.le.s32.totalorder 1, %s15
      %p273 = scmp.lt.s32.totalorder %s15, 3
      %p274 = pnand %p272, %p273
      %p275 = pneg %p274
      // Predicated region
      $region49: #{segmentation_forward.1} parent=5 // pred_check
        _
      $region50: #{segmentation_forward.1} parent=5 // pred_check_branch
        %277 = sbr.rel (%p274) target = $region52
      $region51: #{segmentation_forward.1} parent=5 // pred_region
        %s278 = ssub.s32 %s15, 1
        // Predicated region
        $region53: #{segmentation_forward.1} parent=51 // pred_check
          %p279 = pneg %p188
        $region54: #{segmentation_forward.1} parent=51 // pred_check_branch
          %281 = sbr.rel (%p279) target = $region56
        $region55: #{segmentation_forward.1} parent=51 // pred_region
          %282 = dma.done [#allocation3], 8192
        $region56: #{segmentation_forward.1} parent=51 // pred_fallthru
          _
        %p283 = scmp.lt.s32.totalorder %s20, 1
        %s284 = scalar_select %p283, %s20, 1
        %s285 = smul.addr %s284, 2
        %s286 = smul.addr %s285, 4
        %s287 = scalar_lea.vmem %s0, %s286
        %p288 = pneg %p41
        %p289 = pneg %p38
        %p290 = pneg %p62
        %p291 = pneg %p59
        %p292 = pneg %p83
        %p293 = pneg %p80
        %p294 = pneg %p104
        %p295 = pneg %p101
        %p296 = pneg %p125
        %p297 = pneg %p122
        %p298 = pneg %p146
        %p299 = pneg %p143
        %p300 = pneg %p167
        %p301 = pneg %p164
        %p302 = pneg %p188
        %p303 = pneg %p185
        %p304 = pneg %p214
        %p305 = pneg %p211
        %p306 = scmp.lt.s32.totalorder %s20, 1
        %s307 = scalar_select %p306, %s20, 1
        %s308 = smul.addr %s307, 2
        %s309 = smul.addr %s308, 8
        %s310 = scalar_lea.vmem %s8, %s309
        %p311 = scmp.lt.s32.totalorder %s20, 1
        %s312 = scalar_select %p311, %s20, 1
        %s313 = smul.addr %s312, 2
        %s314 = smul.addr %s313, 4
        %s315 = scalar_lea.vmem %s0, %s314
        %p316 = scmp.lt.s32.totalorder %s20, 1
        %s317 = scalar_select %p316, %s20, 1
        %s318 = smul.addr %s317, 2
        %s319 = smul.addr %s318, 8
        %s320 = scalar_lea.vmem %s8, %s319
        %v321 = vld [vmem:[%s315] sm:$0xff]
        %v322 = vld [vmem:[%s1] sm:$0xff]
        %v323 = vld [vmem:[%s2] sm:$0xff]
        %325 = vset.pattern.permute.xlu0 0
        %326 = vperm.xlu0 %325, %v323
        %v327 = vpop.permute.xlu0 %326
        %v330 = vcombine.high %v321, %v321
        %vm331 = vcmask 31744
        %v333 = vsel %vm331, %v322, 0
        %vm335 = vcmask 1043456
        %v336 = vsel %vm335, %v321, 0
        %v338 = vsel %vm335, %v330, 0
        %340 = vmatprep.subr.mxu0 0.0
        %341 = vmatpush1.msra.mxu0 0.0
        %342 = vmatprep.subr.mxu0 0.0
        %343 = vmatpush1.msra.mxu0 0.0
        %344 = vmatprep.subr.mxu0 0.0
        %345 = vmatpush1.msra.mxu0 0.0
        %346 = vmatprep.subr.mxu0 0.0
        %347 = vmatpush1.msra.mxu0 0.0
        %348 = vmatprep.subr.mxu0 0.0
        %349 = vmatpush1.msra.mxu0 0.0
        %350 = vmatprep.subr.mxu0 0.0
        %351 = vmatpush1.msra.mxu0 0.0
        %352 = vmatprep.subr.mxu0 0.0
        %353 = vmatpush1.msra.mxu0 0.0
        %354 = vmatprep.subr.mxu0 0.0
        %355 = vmatpush1.msra.mxu0 0.0
        %356 = vmatprep.subr.mxu0 0.0
        %357 = vmatpush1.msra.mxu0 0.0
        %358 = vmatprep.subr.mxu0 0.0
        %359 = vmatpush1.msra.mxu0 0.0
        %360 = vmatprep.subr.mxu0 0.0
        %361 = vmatpush1.msra.mxu0 0.0
        %362 = vmatprep.subr.mxu0 0.0
        %363 = vmatpush1.msra.mxu0 0.0
        %364 = vmatprep.subr.mxu0 0.0
        %365 = vmatpush1.msra.mxu0 0.0
        %366 = vmatprep.subr.mxu0 0.0
        %367 = vmatpush1.msra.mxu0 0.0
        %368 = vmatprep.subr.mxu0 0.0
        %369 = vmatpush1.msra.mxu0 0.0
        %370 = vmatprep.subr.mxu0 %v338
        %371 = vmatpush1.msra.mxu0 %v336
        %372 = vmatprep.subr.mxu0 0.0
        %373 = vmatpush2.msra.mxu0 0.0
        %374 = vmatprep.subr.mxu0 0.0
        %375 = vmatpush2.msra.mxu0 0.0
        %376 = vmatprep.subr.mxu0 0.0
        %377 = vmatpush2.msra.mxu0 0.0
        %378 = vmatprep.subr.mxu0 0.0
        %379 = vmatpush2.msra.mxu0 0.0
        %380 = vmatprep.subr.mxu0 0.0
        %381 = vmatpush2.msra.mxu0 0.0
        %382 = vmatprep.subr.mxu0 0.0
        %383 = vmatpush2.msra.mxu0 0.0
        %384 = vmatprep.subr.mxu0 0.0
        %385 = vmatpush2.msra.mxu0 0.0
        %386 = vmatprep.subr.mxu0 0.0
        %387 = vmatpush2.msra.mxu0 0.0
        %388 = vmatprep.subr.mxu0 0.0
        %389 = vmatpush2.msra.mxu0 0.0
        %390 = vmatprep.subr.mxu0 0.0
        %391 = vmatpush2.msra.mxu0 0.0
        %392 = vmatprep.subr.mxu0 0.0
        %393 = vmatpush2.msra.mxu0 0.0
        %394 = vmatprep.subr.mxu0 0.0
        %395 = vmatpush2.msra.mxu0 0.0
        %396 = vmatprep.subr.mxu0 0.0
        %397 = vmatpush2.msra.mxu0 0.0
        %398 = vmatprep.subr.mxu0 0.0
        %399 = vmatpush2.msra.mxu0 0.0
        %400 = vmatprep.subr.mxu0 0.0
        %401 = vmatpush2.msra.mxu0 0.0
        %402 = vmatprep.subr.mxu0 0.0
        %403 = vmatpush2.msra.mxu0 0.0
        %404 = vmatprep.mubr.f32.mxu0 0.0
        %405 = vmatmul.mubr.f32.gmra.mxu0 %v333
        %v406 = vpop.f32.mrf.mxu0
        %v407 = vadd.f32 %v327, %v406
        %v408 = vpop.f32.mrf.mxu0
        %v409 = vadd.f32 %v327, %v408
        %410 = vdwg.mxu0
        %v411 = vmax.f32 %v407, 0.0
        %v412 = vmax.f32 %v409, 0.0
        %v413 = vld [vmem:[%s3] sm:$0xff]
        %v414 = vld [vmem:[%s3 + $0x8] sm:$0xff]
        %v415 = vld [vmem:[%s3 + $0x10] sm:$0xff]
        %v416 = vld [vmem:[%s3 + $0x18] sm:$0xff]
        %v417 = vld [vmem:[%s4] sm:$0xff]
        %v418 = vld [vmem:[%s4 + $0x8] sm:$0xff]
        %v419 = vld [vmem:[%s4 + $0x10] sm:$0xff]
        %v420 = vld [vmem:[%s4 + $0x18] sm:$0xff]
        %422 = vset.pattern.permute.xlu0 0
        %423 = vperm.xlu0 %422, %v417
        %v424 = vpop.permute.xlu0 %423
        %427 = vset.pattern.permute.xlu0 0
        %428 = vperm.xlu0 %427, %v418
        %v429 = vpop.permute.xlu0 %428
        %432 = vset.pattern.permute.xlu0 0
        %433 = vperm.xlu0 %432, %v419
        %v434 = vpop.permute.xlu0 %433
        %437 = vset.pattern.permute.xlu0 0
        %438 = vperm.xlu0 %437, %v420
        %v439 = vpop.permute.xlu0 %438
        %vm441 = vcmask 64512
        %v443 = vsel %vm441, %v413, 0
        %v446 = vsel %vm441, %v414, 0
        %v449 = vsel %vm441, %v415, 0
        %v452 = vsel %vm441, %v416, 0
        %454 = vmatprep.subr.mxu0 0.0
        %455 = vmatpush1.msra.mxu0 0.0
        %456 = vmatprep.subr.mxu0 0.0
        %457 = vmatpush1.msra.mxu0 0.0
        %458 = vmatprep.subr.mxu0 0.0
        %459 = vmatpush1.msra.mxu0 0.0
        %460 = vmatprep.subr.mxu0 0.0
        %461 = vmatpush1.msra.mxu0 0.0
        %462 = vmatprep.subr.mxu0 0.0
        %463 = vmatpush1.msra.mxu0 0.0
        %464 = vmatprep.subr.mxu0 0.0
        %465 = vmatpush1.msra.mxu0 0.0
        %466 = vmatprep.subr.mxu0 0.0
        %467 = vmatpush1.msra.mxu0 0.0
        %468 = vmatprep.subr.mxu0 0.0
        %469 = vmatpush1.msra.mxu0 0.0
        %470 = vmatprep.subr.mxu0 0.0
        %471 = vmatpush1.msra.mxu0 0.0
        %472 = vmatprep.subr.mxu0 0.0
        %473 = vmatpush1.msra.mxu0 0.0
        %474 = vmatprep.subr.mxu0 0.0
        %475 = vmatpush1.msra.mxu0 0.0
        %476 = vmatprep.subr.mxu0 0.0
        %477 = vmatpush1.msra.mxu0 0.0
        %478 = vmatprep.subr.mxu0 0.0
        %479 = vmatpush1.msra.mxu0 0.0
        %480 = vmatprep.subr.mxu0 0.0
        %481 = vmatpush1.msra.mxu0 0.0
        %482 = vmatprep.subr.mxu0 0.0
        %483 = vmatpush1.msra.mxu0 0.0
        %484 = vmatprep.subr.mxu0 %v412
        %485 = vmatpush1.msra.mxu0 %v411
        %486 = vmatprep.subr.mxu0 0.0
        %487 = vmatpush2.msra.mxu0 0.0
        %488 = vmatprep.subr.mxu0 0.0
        %489 = vmatpush2.msra.mxu0 0.0
        %490 = vmatprep.subr.mxu0 0.0
        %491 = vmatpush2.msra.mxu0 0.0
        %492 = vmatprep.subr.mxu0 0.0
        %493 = vmatpush2.msra.mxu0 0.0
        %494 = vmatprep.subr.mxu0 0.0
        %495 = vmatpush2.msra.mxu0 0.0
        %496 = vmatprep.subr.mxu0 0.0
        %497 = vmatpush2.msra.mxu0 0.0
        %498 = vmatprep.subr.mxu0 0.0
        %499 = vmatpush2.msra.mxu0 0.0
        %500 = vmatprep.subr.mxu0 0.0
        %501 = vmatpush2.msra.mxu0 0.0
        %502 = vmatprep.subr.mxu0 0.0
        %503 = vmatpush2.msra.mxu0 0.0
        %504 = vmatprep.subr.mxu0 0.0
        %505 = vmatpush2.msra.mxu0 0.0
        %506 = vmatprep.subr.mxu0 0.0
        %507 = vmatpush2.msra.mxu0 0.0
        %508 = vmatprep.subr.mxu0 0.0
        %509 = vmatpush2.msra.mxu0 0.0
        %510 = vmatprep.subr.mxu0 0.0
        %511 = vmatpush2.msra.mxu0 0.0
        %512 = vmatprep.subr.mxu0 0.0
        %513 = vmatpush2.msra.mxu0 0.0
        %514 = vmatprep.subr.mxu0 0.0
        %515 = vmatpush2.msra.mxu0 0.0
        %516 = vmatprep.subr.mxu0 0.0
        %517 = vmatpush2.msra.mxu0 0.0
        %518 = vmatprep.mubr.f32.mxu0 0.0
        %519 = vmatmul.mubr.f32.gmra.mxu0 %v443
        %v520 = vpop.f32.mrf.mxu0
        %v521 = vadd.f32 %v424, %v520
        %v522 = vpop.f32.mrf.mxu0
        %v523 = vadd.f32 %v424, %v522
        %524 = vmatprep.mubr.f32.mxu0 0.0
        %525 = vmatmul.mubr.f32.gmra.mxu0 %v446
        %v526 = vpop.f32.mrf.mxu0
        %v527 = vadd.f32 %v429, %v526
        %v528 = vpop.f32.mrf.mxu0
        %v529 = vadd.f32 %v429, %v528
        %530 = vmatprep.mubr.f32.mxu0 0.0
        %531 = vmatmul.mubr.f32.gmra.mxu0 %v449
        %v532 = vpop.f32.mrf.mxu0
        %v533 = vadd.f32 %v434, %v532
        %v534 = vpop.f32.mrf.mxu0
        %v535 = vadd.f32 %v434, %v534
        %536 = vmatprep.mubr.f32.mxu0 0.0
        %537 = vmatmul.mubr.f32.gmra.mxu0 %v452
        %v538 = vpop.f32.mrf.mxu0
        %v539 = vadd.f32 %v439, %v538
        %v540 = vpop.f32.mrf.mxu0
        %v541 = vadd.f32 %v439, %v540
        %542 = vdwg.mxu0
        %v543 = vmax.f32 %v521, 0.0
        %v544 = vmax.f32 %v523, 0.0
        %v545 = vmax.f32 %v527, 0.0
        %v546 = vmax.f32 %v529, 0.0
        %v547 = vmax.f32 %v533, 0.0
        %v548 = vmax.f32 %v535, 0.0
        %v549 = vmax.f32 %v539, 0.0
        %v550 = vmax.f32 %v541, 0.0
        %v551 = vld [vmem:[%s5] sm:$0xff]
        %v552 = vld [vmem:[%s6] sm:$0xff]
        %554 = vset.pattern.permute.xlu0 0
        %555 = vperm.xlu0 %554, %v552
        %v556 = vpop.permute.xlu0 %555
        %vm558 = vcmask 261120
        %v560 = vsel %vm558, %v551, 0
        %562 = vmatprep.subr.mxu0 0.0
        %563 = vmatpush1.msra.mxu0 0.0
        %564 = vmatprep.subr.mxu0 0.0
        %565 = vmatpush1.msra.mxu0 0.0
        %566 = vmatprep.subr.mxu0 0.0
        %567 = vmatpush1.msra.mxu0 0.0
        %568 = vmatprep.subr.mxu0 0.0
        %569 = vmatpush1.msra.mxu0 0.0
        %570 = vmatprep.subr.mxu0 0.0
        %571 = vmatpush1.msra.mxu0 0.0
        %572 = vmatprep.subr.mxu0 0.0
        %573 = vmatpush1.msra.mxu0 0.0
        %574 = vmatprep.subr.mxu0 0.0
        %575 = vmatpush1.msra.mxu0 0.0
        %576 = vmatprep.subr.mxu0 0.0
        %577 = vmatpush1.msra.mxu0 0.0
        %578 = vmatprep.subr.mxu0 0.0
        %579 = vmatpush1.msra.mxu0 0.0
        %580 = vmatprep.subr.mxu0 0.0
        %581 = vmatpush1.msra.mxu0 0.0
        %582 = vmatprep.subr.mxu0 0.0
        %583 = vmatpush1.msra.mxu0 0.0
        %584 = vmatprep.subr.mxu0 0.0
        %585 = vmatpush1.msra.mxu0 0.0
        %586 = vmatprep.subr.mxu0 %v550
        %587 = vmatpush1.msra.mxu0 %v549
        %588 = vmatprep.subr.mxu0 %v548
        %589 = vmatpush1.msra.mxu0 %v547
        %590 = vmatprep.subr.mxu0 %v546
        %591 = vmatpush1.msra.mxu0 %v545
        %592 = vmatprep.subr.mxu0 %v544
        %593 = vmatpush1.msra.mxu0 %v543
        %594 = vmatprep.subr.mxu0 0.0
        %595 = vmatpush2.msra.mxu0 0.0
        %596 = vmatprep.subr.mxu0 0.0
        %597 = vmatpush2.msra.mxu0 0.0
        %598 = vmatprep.subr.mxu0 0.0
        %599 = vmatpush2.msra.mxu0 0.0
        %600 = vmatprep.subr.mxu0 0.0
        %601 = vmatpush2.msra.mxu0 0.0
        %602 = vmatprep.subr.mxu0 0.0
        %603 = vmatpush2.msra.mxu0 0.0
        %604 = vmatprep.subr.mxu0 0.0
        %605 = vmatpush2.msra.mxu0 0.0
        %606 = vmatprep.subr.mxu0 0.0
        %607 = vmatpush2.msra.mxu0 0.0
        %608 = vmatprep.subr.mxu0 0.0
        %609 = vmatpush2.msra.mxu0 0.0
        %610 = vmatprep.subr.mxu0 0.0
        %611 = vmatpush2.msra.mxu0 0.0
        %612 = vmatprep.subr.mxu0 0.0
        %613 = vmatpush2.msra.mxu0 0.0
        %614 = vmatprep.subr.mxu0 0.0
        %615 = vmatpush2.msra.mxu0 0.0
        %616 = vmatprep.subr.mxu0 0.0
        %617 = vmatpush2.msra.mxu0 0.0
        %618 = vmatprep.subr.mxu0 0.0
        %619 = vmatpush2.msra.mxu0 0.0
        %620 = vmatprep.subr.mxu0 0.0
        %621 = vmatpush2.msra.mxu0 0.0
        %622 = vmatprep.subr.mxu0 0.0
        %623 = vmatpush2.msra.mxu0 0.0
        %624 = vmatprep.subr.mxu0 0.0
        %625 = vmatpush2.msra.mxu0 0.0
        %626 = vmatprep.mubr.f32.mxu0 0.0
        %627 = vmatmul.mubr.f32.gmra.mxu0 %v560
        %v628 = vpop.f32.mrf.mxu0
        %v629 = vadd.f32 %v556, %v628
        %v630 = vpop.f32.mrf.mxu0
        %v631 = vadd.f32 %v556, %v630
        %632 = vdwg.mxu0
        %v633 = vld [vmem:[#allocation2] sm:$0xff]
        %v634 = vld [vmem:[#allocation2 + $0x8] sm:$0xff]
        %v635 = vld [vmem:[#allocation2 + $0x10] sm:$0xff]
        %v636 = vld [vmem:[#allocation2 + $0x18] sm:$0xff]
        %v637 = vld [vmem:[#allocation2 + $0x20] sm:$0xff]
        %v638 = vld [vmem:[#allocation2 + $0x28] sm:$0xff]
        %v639 = vld [vmem:[#allocation2 + $0x30] sm:$0xff]
        %v640 = vld [vmem:[#allocation2 + $0x38] sm:$0xff]
        %v641 = vld [vmem:[#allocation2 + $0x40] sm:$0xff]
        %v642 = vld [vmem:[#allocation2 + $0x48] sm:$0xff]
        %v643 = vld [vmem:[#allocation2 + $0x50] sm:$0xff]
        %v644 = vld [vmem:[#allocation2 + $0x58] sm:$0xff]
        %v645 = vld [vmem:[#allocation2 + $0x60] sm:$0xff]
        %v646 = vld [vmem:[#allocation2 + $0x68] sm:$0xff]
        %v647 = vld [vmem:[#allocation2 + $0x70] sm:$0xff]
        %v648 = vld [vmem:[#allocation2 + $0x78] sm:$0xff]
        %v649 = vld [vmem:[#allocation2 + $0x80] sm:$0xff]
        %v650 = vld [vmem:[#allocation2 + $0x88] sm:$0xff]
        %v651 = vld [vmem:[#allocation2 + $0x90] sm:$0xff]
        %v652 = vld [vmem:[#allocation2 + $0x98] sm:$0xff]
        %v653 = vld [vmem:[#allocation2 + $0xa0] sm:$0xff]
        %v654 = vld [vmem:[#allocation2 + $0xa8] sm:$0xff]
        %v655 = vld [vmem:[#allocation2 + $0xb0] sm:$0xff]
        %v656 = vld [vmem:[#allocation2 + $0xb8] sm:$0xff]
        %v657 = vld [vmem:[#allocation2 + $0xc0] sm:$0xff]
        %v658 = vld [vmem:[#allocation2 + $0xc8] sm:$0xff]
        %v659 = vld [vmem:[#allocation2 + $0xd0] sm:$0xff]
        %v660 = vld [vmem:[#allocation2 + $0xd8] sm:$0xff]
        %v661 = vld [vmem:[#allocation2 + $0xe0] sm:$0xff]
        %v662 = vld [vmem:[#allocation2 + $0xe8] sm:$0xff]
        %v663 = vld [vmem:[#allocation2 + $0xf0] sm:$0xff]
        %v664 = vld [vmem:[#allocation2 + $0xf8] sm:$0xff]
        %v665 = vld [vmem:[#allocation2 + $0x100] sm:$0xff]
        %v666 = vld [vmem:[#allocation2 + $0x108] sm:$0xff]
        %v667 = vld [vmem:[#allocation2 + $0x110] sm:$0xff]
        %v668 = vld [vmem:[#allocation2 + $0x118] sm:$0xff]
        %v669 = vld [vmem:[#allocation2 + $0x120] sm:$0xff]
        %v670 = vld [vmem:[#allocation2 + $0x128] sm:$0xff]
        %v671 = vld [vmem:[#allocation2 + $0x130] sm:$0xff]
        %v672 = vld [vmem:[#allocation2 + $0x138] sm:$0xff]
        %v673 = vld [vmem:[#allocation2 + $0x140] sm:$0xff]
        %v674 = vld [vmem:[#allocation2 + $0x148] sm:$0xff]
        %v675 = vld [vmem:[#allocation2 + $0x150] sm:$0xff]
        %v676 = vld [vmem:[#allocation2 + $0x158] sm:$0xff]
        %v677 = vld [vmem:[#allocation2 + $0x160] sm:$0xff]
        %v678 = vld [vmem:[#allocation2 + $0x168] sm:$0xff]
        %v679 = vld [vmem:[#allocation2 + $0x170] sm:$0xff]
        %v680 = vld [vmem:[#allocation2 + $0x178] sm:$0xff]
        %v681 = vld [vmem:[#allocation2 + $0x180] sm:$0xff]
        %v682 = vld [vmem:[#allocation2 + $0x188] sm:$0xff]
        %v683 = vld [vmem:[#allocation2 + $0x190] sm:$0xff]
        %v684 = vld [vmem:[#allocation2 + $0x198] sm:$0xff]
        %v685 = vld [vmem:[#allocation2 + $0x1a0] sm:$0xff]
        %v686 = vld [vmem:[#allocation2 + $0x1a8] sm:$0xff]
        %v687 = vld [vmem:[#allocation2 + $0x1b0] sm:$0xff]
        %v688 = vld [vmem:[#allocation2 + $0x1b8] sm:$0xff]
        %v689 = vld [vmem:[#allocation2 + $0x1c0] sm:$0xff]
        %v690 = vld [vmem:[#allocation2 + $0x1c8] sm:$0xff]
        %v691 = vld [vmem:[#allocation2 + $0x1d0] sm:$0xff]
        %v692 = vld [vmem:[#allocation2 + $0x1d8] sm:$0xff]
        %v693 = vld [vmem:[#allocation2 + $0x1e0] sm:$0xff]
        %v694 = vld [vmem:[#allocation2 + $0x1e8] sm:$0xff]
        %v695 = vld [vmem:[#allocation2 + $0x1f0] sm:$0xff]
        %v696 = vld [vmem:[#allocation2 + $0x1f8] sm:$0xff]
        %697 = vmatprep.subr.mxu0 %v664
        %698 = vmatpush1.msra.mxu0 %v663
        %699 = vmatprep.subr.mxu0 %v662
        %700 = vmatpush1.msra.mxu0 %v661
        %701 = vmatprep.subr.mxu0 %v660
        %702 = vmatpush1.msra.mxu0 %v659
        %703 = vmatprep.subr.mxu0 %v658
        %704 = vmatpush1.msra.mxu0 %v657
        %705 = vmatprep.subr.mxu0 %v656
        %706 = vmatpush1.msra.mxu0 %v655
        %707 = vmatprep.subr.mxu0 %v654
        %708 = vmatpush1.msra.mxu0 %v653
        %709 = vmatprep.subr.mxu0 %v652
        %710 = vmatpush1.msra.mxu0 %v651
        %711 = vmatprep.subr.mxu0 %v650
        %712 = vmatpush1.msra.mxu0 %v649
        %713 = vmatprep.subr.mxu0 %v648
        %714 = vmatpush1.msra.mxu0 %v647
        %715 = vmatprep.subr.mxu0 %v646
        %716 = vmatpush1.msra.mxu0 %v645
        %717 = vmatprep.subr.mxu0 %v644
        %718 = vmatpush1.msra.mxu0 %v643
        %719 = vmatprep.subr.mxu0 %v642
        %720 = vmatpush1.msra.mxu0 %v641
        %721 = vmatprep.subr.mxu0 %v640
        %722 = vmatpush1.msra.mxu0 %v639
        %723 = vmatprep.subr.mxu0 %v638
        %724 = vmatpush1.msra.mxu0 %v637
        %725 = vmatprep.subr.mxu0 %v636
        %726 = vmatpush1.msra.mxu0 %v635
        %727 = vmatprep.subr.mxu0 %v634
        %728 = vmatpush1.msra.mxu0 %v633
        %729 = vmatprep.subr.mxu0 %v696
        %730 = vmatpush2.msra.mxu0 %v695
        %731 = vmatprep.subr.mxu0 %v694
        %732 = vmatpush2.msra.mxu0 %v693
        %733 = vmatprep.subr.mxu0 %v692
        %734 = vmatpush2.msra.mxu0 %v691
        %735 = vmatprep.subr.mxu0 %v690
        %736 = vmatpush2.msra.mxu0 %v689
        %737 = vmatprep.subr.mxu0 %v688
        %738 = vmatpush2.msra.mxu0 %v687
        %739 = vmatprep.subr.mxu0 %v686
        %740 = vmatpush2.msra.mxu0 %v685
        %741 = vmatprep.subr.mxu0 %v684
        %742 = vmatpush2.msra.mxu0 %v683
        %743 = vmatprep.subr.mxu0 %v682
        %744 = vmatpush2.msra.mxu0 %v681
        %745 = vmatprep.subr.mxu0 %v680
        %746 = vmatpush2.msra.mxu0 %v679
        %747 = vmatprep.subr.mxu0 %v678
        %748 = vmatpush2.msra.mxu0 %v677
        %749 = vmatprep.subr.mxu0 %v676
        %750 = vmatpush2.msra.mxu0 %v675
        %751 = vmatprep.subr.mxu0 %v674
        %752 = vmatpush2.msra.mxu0 %v673
        %753 = vmatprep.subr.mxu0 %v672
        %754 = vmatpush2.msra.mxu0 %v671
        %755 = vmatprep.subr.mxu0 %v670
        %756 = vmatpush2.msra.mxu0 %v669
        %757 = vmatprep.subr.mxu0 %v668
        %758 = vmatpush2.msra.mxu0 %v667
        %759 = vmatprep.subr.mxu0 %v666
        %760 = vmatpush2.msra.mxu0 %v665
        %761 = vmatprep.mubr.f32.mxu0 %v631
        %762 = vmatmul.mubr.f32.gmra.mxu0 %v629
        %v763 = vpop.f32.mrf.mxu0
        %v764 = vadd.f32 0.0, %v763
        %v765 = vpop.f32.mrf.mxu0
        %v766 = vadd.f32 0.0, %v765
        %767 = vdwg.mxu0
        %768 = vst [vmem:[%s320] sm:$0xff] %v764
        %769 = vst [vmem:[%s320 + $0x8] sm:$0xff] %v766
        %p770 = scmp.lt.s32.totalorder %s20, 1
        %s771 = scalar_select %p770, %s20, 1
        %s772 = smul.addr %s771, 2
        %s773 = smul.addr %s772, 8
        %s774 = scalar_lea.vmem %s8, %s773
        // Predicated region
        $region57: #{segmentation_forward.1} parent=51 // pred_check
          %p775 = pneg %p211
        $region58: #{segmentation_forward.1} parent=51 // pred_check_branch
          %777 = sbr.rel (%p775) target = $region60
        $region59: #{segmentation_forward.1} parent=51 // pred_region
          _
        $region60: #{segmentation_forward.1} parent=51 // pred_fallthru
          _
      $region52: #{segmentation_forward.1} parent=5 // pred_fallthru
        _
      %p778 = scmp.le.s32.totalorder 2, %s15
      // Predicated region
      $region61: #{segmentation_forward.1} parent=5 // pred_check
        %p779 = pneg %p778
      $region62: #{segmentation_forward.1} parent=5 // pred_check_branch
        %781 = sbr.rel (%p779) target = $region64
      $region63: #{segmentation_forward.1} parent=5 // pred_region
        %s782 = ssub.s32 %s15, 2
        // Predicated region
        $region65: #{segmentation_forward.1} parent=63 // pred_check
          %p783 = pneg %p217
        $region66: #{segmentation_forward.1} parent=63 // pred_check_branch
          %785 = sbr.rel (%p783) target = $region68
        $region67: #{segmentation_forward.1} parent=63 // pred_region
          %p786 = scmp.lt.s32.totalorder %s21, 1
          %s787 = scalar_select %p786, %s21, 1
          %s788 = smul.addr %s787, 2
          %s789 = smul.addr %s788, 8
          %s790 = scalar_lea.vmem %s8, %s789
        $region68: #{segmentation_forward.1} parent=63 // pred_fallthru
          _
      $region64: #{segmentation_forward.1} parent=5 // pred_fallthru
        _
    $region6: #{segmentation_forward.1} parent=1 // loop_footer
      %s19 = sadd.s32 1, %s15
    $region7: #{segmentation_forward.1} parent=1 // loop_footer_branch
      %14 = sbr.rel target = $region3
    $region8: #{segmentation_forward.1} parent=1 // loop_exit
      _
    %791 = vsyncpa [#allocation3], 1
    %s792 = scalar_lea.sflag [#allocation3], 1
    %793 = vsyncpa %s792, 1

</llo_original>
